<compile_context>
chip_gen: v6e
topology: v6e:2x2x1
jax: 0.10.0
libtpu: 0.0.40
codegen_flags: <defaults>
</compile_context>

<pallas_src>
import functools

import jax
import jax.numpy as jnp
from jax import lax
from jax.experimental import pallas as pl
from jax.experimental.pallas import tpu as pltpu


def _position_loss_kernel(kart_ref, puck_ref, goal_ref, w_ref, out_ref, acc_ref, *,
                          goal_weight, t_folded, t_block, tiles_per_core, acc_rows,
                          needs_mask):
    """One (core, tile) step of the collapsed position-loss reduction.

    kart_ref / puck_ref : (t_block, L) native-dtype tiles, xy interleaved on lanes.
    goal_ref            : (1, L) f32, [gx, gy, gx, gy, ...].
    w_ref               : (1, L) f32, (log_prob - mean(log_prob)) / T at even lanes, 0 at odd.
    out_ref             : (1, 8, 128) f32 per-core output block (scalar broadcast).
    acc_ref             : (acc_rows, L-1) f32 VMEM vector accumulator (per core).
    """
    core = pl.program_id(0)                 # "parallel" axis -> TensorCore split on v7x
    step = pl.program_id(1)                 # "arbitrary" reduction axis over T tiles
    gidx = core * tiles_per_core + step     # global tile index (may overshoot -> masked)

    @pl.when(step == 0)
    def _init():
        acc_ref[...] = jnp.zeros_like(acc_ref)

    kk = kart_ref[...].astype(jnp.float32)  # in-kernel cast; no wrapper up-cast pass
    pp = puck_ref[...].astype(jnp.float32)
    gg = goal_ref[...]                      # (1, L) f32, broadcasts over rows

    sq_kp = (kk - pp) ** 2                  # interleaved dx^2, dy^2
    sq_gp = (gg - pp) ** 2

    # Adjacent-lane pairwise sum: even lane 2j -> dx_j^2 + dy_j^2.  Odd lanes are junk and
    # are zeroed by the weight row (which is exactly 0 on odd lanes).
    pair_kp = sq_kp[:, :-1] + sq_kp[:, 1:]  # (t_block, L-1)
    pair_gp = sq_gp[:, :-1] + sq_gp[:, 1:]

    reward = jnp.sqrt(pair_kp) + goal_weight * jnp.sqrt(pair_gp)
    w = w_ref[...]
    weighted = reward * w[:, :-1]           # odd lanes -> exactly 0

    groups = t_block // acc_rows            # <= 16 (acc_rows = min(256, t_block))
    rem = t_block - groups * acc_rows       # multiple of 8, < acc_rows

    def accumulate(vals):
        # Slab-wise VPU adds into the vector accumulator; no per-tile cross-lane reduce.
        part = vals[0:acc_rows]
        for g in range(1, groups):
            part = part + vals[g * acc_rows:(g + 1) * acc_rows]
        acc_ref[...] += part
        if rem:
            acc_ref[0:rem, :] += vals[groups * acc_rows:groups * acc_rows + rem]

    if needs_mask:
        is_full = (gidx + 1) * t_block <= t_folded
        is_tail = (gidx + 1) * t_block > t_folded

        @pl.when(is_full)
        def _full_tile():
            accumulate(weighted)

        @pl.when(is_tail)
        def _tail_tile():
            # Mask on the final product: garbage (even NaN) rows of the partial/phantom
            # block are replaced by 0 by the select, never multiplied in.
            rows = lax.broadcasted_iota(jnp.int32, (t_block, 1), 0) + gidx * t_block
            accumulate(jnp.where(rows < t_folded, weighted, 0.0))
    else:
        accumulate(weighted)

    @pl.when(step == tiles_per_core - 1)
    def _finalize():
        total = jnp.sum(acc_ref[...])       # single cross-lane/sublane reduce per core
        out_ref[...] = jnp.broadcast_to(total, out_ref.shape)


def position_loss_pallas(kart, puck, log_prob, goal_position, goal_weight=1.0):
    """Pallas equivalent of position_loss(goal_position, goal_weight)(kart, puck, log_prob).

    kart, puck: (T, N, 2), log_prob: (N,). Returns a scalar f32.
    """
    T, N, D = kart.shape
    assert D == 2 and puck.shape == (T, N, 2) and log_prob.shape == (N,)
    two_n = 2 * N

    # ---- lane folding for small N: pack k timesteps side by side on the lane axis -------
    k_max = max(1, 128 // two_n)
    k_fold = 1
    for cand in range(min(k_max, T), 0, -1):
        if T % cand == 0:
            k_fold = cand
            break
    t_folded = T // k_fold
    lane_w = two_n * k_fold

    kart2 = kart.reshape(t_folded, lane_w)    # free row-major reshape, no transpose
    puck2 = puck.reshape(t_folded, lane_w)

    # ---- tiny O(N) side inputs in plain JAX (negligible HBM traffic) --------------------
    lp = log_prob.astype(jnp.float32)
    w_even = (lp - jnp.sum(lp) / N) / T       # collapsed weight (lp - mean(lp)) / T
    w_inter = jnp.stack([w_even, jnp.zeros_like(w_even)], axis=-1).reshape(two_n)
    wvec = jnp.tile(w_inter, (k_fold,)).reshape(1, lane_w)
    # PyTorch module uses goal = (0, goal_position).
    goal_row = jnp.tile(jnp.array([0.0, float(goal_position)], jnp.float32),
                        (N * k_fold,)).reshape(1, lane_w)

    # ---- tiling --------------------------------------------------------------------------
    itemsize = jnp.dtype(kart.dtype).itemsize
    row_bytes = lane_w * itemsize
    t_blk = min(4096, max(8, (2 * 1024 * 1024) // row_bytes))   # ~1-2 MiB per input tile
    t_blk = max(8, (t_blk // 8) * 8)
    if t_blk > t_folded:
        t_blk = ((t_folded + 7) // 8) * 8     # single (possibly partial) tile

    num_tiles = int(pl.cdiv(t_folded, t_blk))
    tiles_per_core = int(pl.cdiv(num_tiles, 2))     # 2-way split -> both v7x TensorCores
    needs_mask = (t_folded % t_blk != 0) or (num_tiles != 2 * tiles_per_core)
    acc_rows = min(256, t_blk)

    kernel = functools.partial(
        _position_loss_kernel,
        goal_weight=float(goal_weight),
        t_folded=t_folded,
        t_block=t_blk,
        tiles_per_core=tiles_per_core,
        acc_rows=acc_rows,
        needs_mask=needs_mask,
    )

    def data_map(c, t, _nt=num_tiles, _tpc=tiles_per_core):
        # Contiguous half of the tiles per core; phantom tiles (odd tile counts) are clamped
        # back in range and contribute exactly 0 via the tail mask.
        return (jnp.minimum(c * _tpc + t, _nt - 1), 0)

    out = pl.pallas_call(
        kernel,
        out_shape=jax.ShapeDtypeStruct((2, 8, 128), jnp.float32),
        grid=(2, tiles_per_core),
        in_specs=[
            pl.BlockSpec((t_blk, lane_w), data_map),           # kart tile (pipelined)
            pl.BlockSpec((t_blk, lane_w), data_map),           # puck tile (pipelined)
            pl.BlockSpec((1, lane_w), lambda c, t: (0, 0)),    # goal row (resident)
            pl.BlockSpec((1, lane_w), lambda c, t: (0, 0)),    # weight row (resident)
        ],
        out_specs=pl.BlockSpec((1, 8, 128), lambda c, t: (c, 0, 0)),
        scratch_shapes=[pltpu.VMEM((acc_rows, lane_w - 1), jnp.float32)],
        compiler_params=pltpu.CompilerParams(
            dimension_semantics=("parallel", "arbitrary"),
            vmem_limit_bytes=48 * 1024 * 1024,
        ),
    )(kart2, puck2, goal_row, wvec)
    return out[0, 0, 0] + out[1, 0, 0]


def position_loss_reference(kart, puck, log_prob, goal_position, goal_weight=1.0):
    """Pure-JAX reference mirroring the PyTorch 3-D branch."""
    goal = jnp.array([0.0, float(goal_position)], dtype=jnp.float32)
    kart = kart.astype(jnp.float32)
    puck = puck.astype(jnp.float32)
    log_prob = log_prob.astype(jnp.float32)
    reward = jnp.sqrt(((kart - puck) ** 2).sum(-1)) + float(goal_weight) * jnp.sqrt(
        ((goal - puck) ** 2).sum(-1)
    )  # (T, N)
    r = -reward
    lp = -log_prob[None, :]
    weighted = (lp * (r - r.mean(axis=1, keepdims=True))).sum(axis=1)  # (T,)
    return weighted.mean()


if __name__ == "__main__":
    goal_position = 1.0

    # --- Test 1: tiny shapes, f32, lane folding (N=16 -> 4 timesteps per row),
    #             single partial tile + phantom tile on the second core slot. -------------
    T1, N1 = 8, 16
    k1, k2, k3 = jax.random.split(jax.random.PRNGKey(0), 3)
    kart1 = jax.random.normal(k1, (T1, N1, 2), dtype=jnp.float32)
    puck1 = jax.random.normal(k2, (T1, N1, 2), dtype=jnp.float32)
    lp1 = jax.random.normal(k3, (N1,), dtype=jnp.float32)
    r1 = jax.block_until_ready(position_loss_pallas(kart1, puck1, lp1, goal_position, 1.0))
    ref1 = position_loss_reference(kart1, puck1, lp1, goal_position, 1.0)
    assert jnp.allclose(r1, ref1, rtol=1e-5, atol=1e-5), (r1, ref1)

    # --- Test 2: bf16 inputs, multi-tile grid with a partial tail tile (odd tile count). --
    T2, N2 = 10000, 64
    k4, k5, k6 = jax.random.split(jax.random.PRNGKey(1), 3)
    kart2 = jax.random.normal(k4, (T2, N2, 2), dtype=jnp.float32).astype(jnp.bfloat16)
    puck2 = jax.random.normal(k5, (T2, N2, 2), dtype=jnp.float32).astype(jnp.bfloat16)
    lp2 = jax.random.normal(k6, (N2,), dtype=jnp.float32)
    r2 = jax.block_until_ready(position_loss_pallas(kart2, puck2, lp2, goal_position, 0.5))
    ref2 = position_loss_reference(kart2, puck2, lp2, goal_position, 0.5)
    assert jnp.allclose(r2, ref2, rtol=2e-3, atol=5e-3), (r2, ref2)

    # --- Test 3: f32, exactly two full tiles (no-mask fast path, one tile per core slot). -
    T3, N3 = 8192, 64
    k7, k8, k9 = jax.random.split(jax.random.PRNGKey(2), 3)
    kart3 = jax.random.normal(k7, (T3, N3, 2), dtype=jnp.float32)
    puck3 = jax.random.normal(k8, (T3, N3, 2), dtype=jnp.float32)
    lp3 = jax.random.normal(k9, (N3,), dtype=jnp.float32)
    r3 = jax.block_until_ready(position_loss_pallas(kart3, puck3, lp3, goal_position, 2.0))
    ref3 = position_loss_reference(kart3, puck3, lp3, goal_position, 2.0)
    assert jnp.allclose(r3, ref3, rtol=2e-3, atol=5e-3), (r3, ref3)

    print("KERNEL_OK")
</pallas_src>

<mosaic_0001>
module attributes {stable_mosaic.version = 11 : i64} {
  func.func @_position_loss_kernel(%arg0: i32, %arg1: i32, %arg2: memref<8x128xf32, #tpu.memory_space<vmem>>, %arg3: memref<8x128xf32, #tpu.memory_space<vmem>>, %arg4: memref<1x128xf32, #tpu.memory_space<vmem>>, %arg5: memref<1x128xf32, #tpu.memory_space<vmem>>, %arg6: memref<1x8x128xf32, #tpu.memory_space<vmem>>, %arg7: memref<8x127xf32, #tpu.memory_space<vmem>>) attributes {dimension_semantics = [#tpu.dimension_semantics<parallel>, #tpu.dimension_semantics<arbitrary>], iteration_bounds = array<i64: 2, 1>, scalar_prefetch = 0 : i64, scratch_operands = 1 : i64, tpu.core_type = #tpu.core_type<tc>, window_params = [{transform_indices = @transform_0, window_bounds = array<i64: 8, 128>}, {transform_indices = @transform_1, window_bounds = array<i64: 8, 128>}, {pipeline_mode = #tpu.pipeline_mode<synchronous>, transform_indices = @transform_2, window_bounds = array<i64: 1, 128>}, {pipeline_mode = #tpu.pipeline_mode<synchronous>, transform_indices = @transform_3, window_bounds = array<i64: 1, 128>}, {transform_indices = @transform_4, window_bounds = array<i64: 1, 8, 128>}]} {
    %c1_i32 = arith.constant 1 : i32
    %0 = arith.muli %arg0, %c1_i32 : i32
    %1 = arith.addi %0, %arg1 : i32
    %c0_i32 = arith.constant 0 : i32
    %2 = arith.cmpi eq, %arg1, %c0_i32 : i32
    %3 = arith.extui %2 : i1 to i32
    %c0_i32_0 = arith.constant 0 : i32
    %4 = arith.cmpi ne, %3, %c0_i32_0 : i32
    scf.if %4 {
      %cst_16 = arith.constant 0.000000e+00 : f32
      %41 = vector.broadcast %cst_16 : f32 to vector<8x127xf32>
      %c0_17 = arith.constant 0 : index
      %c0_18 = arith.constant 0 : index
      %42 = vector.load %arg7[%c0_17, %c0_18] : memref<8x127xf32, #tpu.memory_space<vmem>>, vector<8x127xf32>
      tpu.vector_store %arg7[%c0_17, %c0_18], %41 {strides = array<i32>} : memref<8x127xf32, #tpu.memory_space<vmem>>, vector<8x127xf32>,
    } else {
    }
    %c0 = arith.constant 0 : index
    %c0_1 = arith.constant 0 : index
    %5 = vector.load %arg2[%c0, %c0_1] : memref<8x128xf32, #tpu.memory_space<vmem>>, vector<8x128xf32>
    %c0_2 = arith.constant 0 : index
    %c0_3 = arith.constant 0 : index
    %6 = vector.load %arg3[%c0_2, %c0_3] : memref<8x128xf32, #tpu.memory_space<vmem>>, vector<8x128xf32>
    %c0_4 = arith.constant 0 : index
    %c0_5 = arith.constant 0 : index
    %7 = vector.load %arg4[%c0_4, %c0_5] : memref<1x128xf32, #tpu.memory_space<vmem>>, vector<1x128xf32>
    %8 = arith.subf %5, %6 : vector<8x128xf32>
    %9 = arith.mulf %8, %8 : vector<8x128xf32>
    %10 = vector.broadcast %7 : vector<1x128xf32> to vector<8x128xf32>
    %11 = arith.subf %10, %6 : vector<8x128xf32>
    %12 = arith.mulf %11, %11 : vector<8x128xf32>
    %13 = vector.extract_strided_slice %9 {offsets = [0, 0], sizes = [8, 127], strides = [1, 1]} : vector<8x128xf32> to vector<8x127xf32>
    %14 = vector.extract_strided_slice %9 {offsets = [0, 1], sizes = [8, 127], strides = [1, 1]} : vector<8x128xf32> to vector<8x127xf32>
    %15 = arith.addf %13, %14 : vector<8x127xf32>
    %16 = vector.extract_strided_slice %12 {offsets = [0, 0], sizes = [8, 127], strides = [1, 1]} : vector<8x128xf32> to vector<8x127xf32>
    %17 = vector.extract_strided_slice %12 {offsets = [0, 1], sizes = [8, 127], strides = [1, 1]} : vector<8x128xf32> to vector<8x127xf32>
    %18 = arith.addf %16, %17 : vector<8x127xf32>
    %19 = math.sqrt %15 : vector<8x127xf32>
    %20 = math.sqrt %18 : vector<8x127xf32>
    %cst = arith.constant 1.000000e+00 : f32
    %21 = vector.broadcast %cst : f32 to vector<8x127xf32>
    %22 = arith.mulf %21, %20 : vector<8x127xf32>
    %23 = arith.addf %19, %22 : vector<8x127xf32>
    %c0_6 = arith.constant 0 : index
    %c0_7 = arith.constant 0 : index
    %24 = vector.load %arg5[%c0_6, %c0_7] : memref<1x128xf32, #tpu.memory_space<vmem>>, vector<1x128xf32>
    %25 = vector.extract_strided_slice %24 {offsets = [0, 0], sizes = [1, 127], strides = [1, 1]} : vector<1x128xf32> to vector<1x127xf32>
    %26 = vector.broadcast %25 : vector<1x127xf32> to vector<8x127xf32>
    %27 = arith.mulf %23, %26 : vector<8x127xf32>
    %c1_i32_8 = arith.constant 1 : i32
    %28 = arith.addi %1, %c1_i32_8 : i32
    %c8_i32 = arith.constant 8 : i32
    %29 = arith.muli %28, %c8_i32 : i32
    %c2_i32 = arith.constant 2 : i32
    %30 = arith.cmpi sle, %29, %c2_i32 : i32
    %c1_i32_9 = arith.constant 1 : i32
    %31 = arith.addi %1, %c1_i32_9 : i32
    %c8_i32_10 = arith.constant 8 : i32
    %32 = arith.muli %31, %c8_i32_10 : i32
    %c2_i32_11 = arith.constant 2 : i32
    %33 = arith.cmpi sgt, %32, %c2_i32_11 : i32
    %34 = arith.extui %30 : i1 to i32
    %c0_i32_12 = arith.constant 0 : i32
    %35 = arith.cmpi ne, %34, %c0_i32_12 : i32
    scf.if %35 {
      %c0_16 = arith.constant 0 : index
      %c0_17 = arith.constant 0 : index
      %41 = vector.load %arg7[%c0_16, %c0_17] : memref<8x127xf32, #tpu.memory_space<vmem>>, vector<8x127xf32>
      %42 = arith.addf %41, %27 : vector<8x127xf32>
      %c0_18 = arith.constant 0 : index
      %c0_19 = arith.constant 0 : index
      %43 = vector.load %arg7[%c0_18, %c0_19] : memref<8x127xf32, #tpu.memory_space<vmem>>, vector<8x127xf32>
      tpu.vector_store %arg7[%c0_18, %c0_19], %42 {strides = array<i32>} : memref<8x127xf32, #tpu.memory_space<vmem>>, vector<8x127xf32>,
    } else {
    }
    %36 = arith.extui %33 : i1 to i32
    %c0_i32_13 = arith.constant 0 : i32
    %37 = arith.cmpi ne, %36, %c0_i32_13 : i32
    scf.if %37 {
      %41 = tpu.iota {dimensions = array<i32: 0>} : vector<8x1xi32>
      %c8_i32_16 = arith.constant 8 : i32
      %42 = arith.muli %1, %c8_i32_16 : i32
      %43 = vector.broadcast %42 : i32 to vector<8x1xi32>
      %44 = arith.addi %41, %43 : vector<8x1xi32>
      %c2_i32_17 = arith.constant 2 : i32
      %45 = vector.broadcast %c2_i32_17 : i32 to vector<8x1xi32>
      %46 = arith.cmpi slt, %44, %45 : vector<8x1xi32>
      %cst_18 = arith.constant 0.000000e+00 : f32
      %47 = vector.shape_cast %46 : vector<8x1xi1> to vector<8x1xi1>
      %48 = vector.broadcast %47 : vector<8x1xi1> to vector<8x127xi1>
      %49 = vector.broadcast %cst_18 : f32 to vector<8x127xf32>
      %50 = arith.select %48, %27, %49 : vector<8x127xi1>, vector<8x127xf32>
      %c0_19 = arith.constant 0 : index
      %c0_20 = arith.constant 0 : index
      %51 = vector.load %arg7[%c0_19, %c0_20] : memref<8x127xf32, #tpu.memory_space<vmem>>, vector<8x127xf32>
      %52 = arith.addf %51, %50 : vector<8x127xf32>
      %c0_21 = arith.constant 0 : index
      %c0_22 = arith.constant 0 : index
      %53 = vector.load %arg7[%c0_21, %c0_22] : memref<8x127xf32, #tpu.memory_space<vmem>>, vector<8x127xf32>
      tpu.vector_store %arg7[%c0_21, %c0_22], %52 {strides = array<i32>} : memref<8x127xf32, #tpu.memory_space<vmem>>, vector<8x127xf32>,
    } else {
    }
    %c0_i32_14 = arith.constant 0 : i32
    %38 = arith.cmpi eq, %arg1, %c0_i32_14 : i32
    %39 = arith.extui %38 : i1 to i32
    %c0_i32_15 = arith.constant 0 : i32
    %40 = arith.cmpi ne, %39, %c0_i32_15 : i32
    scf.if %40 {
      %c0_16 = arith.constant 0 : index
      %c0_17 = arith.constant 0 : index
      %41 = vector.load %arg7[%c0_16, %c0_17] : memref<8x127xf32, #tpu.memory_space<vmem>>, vector<8x127xf32>
      %42 = vector.shape_cast %41 : vector<8x127xf32> to vector<1x8x127xf32>
      %cst_18 = arith.constant dense<0.000000e+00> : vector<1xf32>
      %43 = vector.multi_reduction <add>, %42, %cst_18 [1, 2] : vector<1x8x127xf32> to vector<1xf32>
      %44 = vector.shape_cast %43 : vector<1xf32> to vector<1x1x1xf32>
      %45 = vector.extract %44[0, 0, 0] : f32 from vector<1x1x1xf32>
      %46 = vector.broadcast %45 : f32 to vector<1x8x128xf32>
      %c0_19 = arith.constant 0 : index
      %c0_20 = arith.constant 0 : index
      %c0_21 = arith.constant 0 : index
      %47 = vector.load %arg6[%c0_19, %c0_20, %c0_21] : memref<1x8x128xf32, #tpu.memory_space<vmem>>, vector<1x8x128xf32>
      tpu.vector_store %arg6[%c0_19, %c0_20, %c0_21], %46 {strides = array<i32>} : memref<1x8x128xf32, #tpu.memory_space<vmem>>, vector<1x8x128xf32>,
    } else {
    }
    return
  }
  func.func @transform_0(%arg0: i32, %arg1: i32) -> (i32, i32) {
    %c1_i32 = arith.constant 1 : i32
    %0 = arith.muli %arg0, %c1_i32 : i32
    %1 = arith.addi %0, %arg1 : i32
    %c0_i32 = arith.constant 0 : i32
    %2 = arith.minsi %1, %c0_i32 : i32
    %c0_i32_0 = arith.constant 0 : i32
    %c0_i32_1 = arith.constant 0 : i32
    return %2, %c0_i32_0 : i32, i32
  }
  func.func @transform_1(%arg0: i32, %arg1: i32) -> (i32, i32) {
    %c1_i32 = arith.constant 1 : i32
    %0 = arith.muli %arg0, %c1_i32 : i32
    %1 = arith.addi %0, %arg1 : i32
    %c0_i32 = arith.constant 0 : i32
    %2 = arith.minsi %1, %c0_i32 : i32
    %c0_i32_0 = arith.constant 0 : i32
    %c0_i32_1 = arith.constant 0 : i32
    return %2, %c0_i32_0 : i32, i32
  }
  func.func @transform_2(%arg0: i32, %arg1: i32) -> (i32, i32) {
    %c0_i32 = arith.constant 0 : i32
    %c0_i32_0 = arith.constant 0 : i32
    %c0_i32_1 = arith.constant 0 : i32
    return %c0_i32, %c0_i32_0 : i32, i32
  }
  func.func @transform_3(%arg0: i32, %arg1: i32) -> (i32, i32) {
    %c0_i32 = arith.constant 0 : i32
    %c0_i32_0 = arith.constant 0 : i32
    %c0_i32_1 = arith.constant 0 : i32
    return %c0_i32, %c0_i32_0 : i32, i32
  }
  func.func @transform_4(%arg0: i32, %arg1: i32) -> (i32, i32, i32) {
    %c0_i32 = arith.constant 0 : i32
    %c0_i32_0 = arith.constant 0 : i32
    %c0_i32_1 = arith.constant 0 : i32
    return %arg0, %c0_i32, %c0_i32_0 : i32, i32, i32
  }
}

</mosaic_0001>

<llo_original>
// kernel: tpu_custom_call.1
$region0: #{tpu_custom_call.1}
  #allocation0 [shape = 'u32[]', space=smem, size = 0x4, offset = 0x4, fixed_abs, tag = 'smem constant byte address 0x4 - core index']
  #allocation1 [shape = 'u32[144,128]{1,0:T(1,128)}', space=vmem, size = 0x12000, scoped, tag = 'internal scratch']
  #allocation2 [shape = 'f32[8,127]{1,0:T(8,128)}', space=vmem, size = 0x1000, scoped, tag = 'scratch operand']
  %s0 = inlined_call_operand.hbm [shape: f32[2,128], index: 0, kind: input, shape index: {}]
  %s1 = inlined_call_operand.hbm [shape: f32[2,128], index: 1, kind: input, shape index: {}]
  %s2 = inlined_call_operand.vmem [shape: f32[1,128], index: 2, kind: input, shape index: {}]
  %s3 = inlined_call_operand.vmem [shape: f32[1,128], index: 3, kind: input, shape index: {}]
  %s4 = inlined_call_operand.hbm [shape: f32[2,8,128], index: 4, kind: output, shape index: {}]
  %s5 = sld [smem:[#allocation0]]
  $region73: #{tpu_custom_call.1} parent=0
    _
  %s7 = ssub.s32 1, %s5
  %s8 = scalar_select 0, %s7, %s5
  $region1: #{tpu_custom_call.1} parent=0
    #allocation3 [shape = 'u8[8192]{0}', space=vmem, size = 0x2000, scoped, tag = 'input window, operand 0']
    #allocation4 [shape = 's32[2]{0}', space=sflag, size = 0x8, scoped, tag = 'scoped memory for tpu_custom_call.1']
    #allocation5 [shape = 's32[2]{0}', space=sflag, size = 0x8, scoped, tag = 'scoped memory for tpu_custom_call.1']
    #allocation6 [shape = 'u8[8192]{0}', space=vmem, size = 0x2000, scoped, tag = 'input window, operand 1']
    #allocation7 [shape = 's32[2]{0}', space=sflag, size = 0x8, scoped, tag = 'scoped memory for tpu_custom_call.1']
    #allocation8 [shape = 'u8[8192]{0}', space=vmem, size = 0x2000, scoped, tag = 'output window, operand 0']
    %9 = vsyncpa [#allocation4], 0
    %s10 = scalar_lea.sflag [#allocation4], 1
    %11 = vsyncpa %s10, 0
    %12 = vsyncpa [#allocation7], 0
    %s13 = scalar_lea.sflag [#allocation7], 1
    %14 = vsyncpa %s13, 0
    %15 = vsyncpa [#allocation5], 0
    %s16 = scalar_lea.sflag [#allocation5], 1
    %17 = vsyncpa %s16, 0
    loop: start=0, step=1, limit=4
    $region2: #{tpu_custom_call.1} parent=1 // loop_pre_header
      _
    $region3: #{tpu_custom_call.1} parent=1 // loop_header
      %s19 = sphi 0, %s23
      %p20 = scmp.ge.s32.totalorder %s19, 4
      %s26 = sphi 0, %s38
      %s27 = sphi 0, %s34
      %s28 = sphi 0, %s26
      %s29 = sphi 0, %s27
      %s30 = sphi 0, %s28
      %s31 = sphi 0, %s29
      %s47 = sphi 0, %s49
      %s50 = sphi 0, %s47
      %s51 = sphi 0, %s50
      %s67 = sphi 0, %s51
      %s79 = sphi 0, %s81
      %s82 = sphi 0, %s79
      %s83 = sphi 0, %s82
      %s99 = sphi 0, %s83
      %s103 = sphi 0, %s103
      %s105 = sphi 0, %s103
      %s106 = sphi 0, %s105
      %s120 = sphi 0, %s106
      %s124 = sphi 0, %s124
      %s126 = sphi 0, %s124
      %s127 = sphi 0, %s126
      %s141 = sphi 0, %s127
      %s147 = sphi 0, %s149
      %s150 = sphi 0, %s147
      %s151 = sphi 0, %s150
      %s167 = sphi 0, %s151
    $region4: #{tpu_custom_call.1} parent=1 // loop_header_branch
      %22 = sbr.rel (%p20) target = $region8
    $region5: #{tpu_custom_call.1} parent=1 // loop_body
      %s24 = ssub.s32 %s19, 1
      %s25 = ssub.s32 %s19, 2
      %s32 = sadd.s32 1, %s27
      %p33 = scmp.ge.s32.totalorder %s32, 1
      %s34 = scalar_select %p33, 0, %s32
      %s35 = sadd.s32 1, %s26
      %s36 = scalar_select %p33, %s35, %s26
      %p37 = scmp.ge.s32.totalorder %s36, 2
      %s38 = scalar_select %p37, 0, %s36
      %s39 = sadd.s32 %s26, %s27
      %p40 = scmp.lt.s32.totalorder %s39, 0
      %s41 = scalar_select %p40, %s39, 0
      %s42 = sadd.s32 %s38, %s34
      %p43 = scmp.lt.s32.totalorder %s42, 0
      %s44 = scalar_select %p43, %s42, 0
      %s45 = ssub.s32 %s41, %s44
      %p46 = scmp.eq.s32.totalorder %s45, 0
      %s48 = sadd.s32 %s47, 1
      %s49 = scalar_select %p46, %s47, %s48
      %p52 = pneg %p46
      %p53 = scmp.eq.s32.totalorder %s19, 1
      %p54 = por %p52, %p53
      %p55 = scmp.ne.s32.totalorder %s47, %s50
      %p56 = scmp.eq.s32.totalorder %s19, 0
      %p57 = por %p55, %p56
      %p58 = scmp.ne.s32.totalorder %s47, %s50
      %p59 = scmp.eq.s32.totalorder %s24, 1
      %p60 = por %p58, %p59
      %p61 = scmp.ne.s32.totalorder %s50, %s51
      %p62 = scmp.eq.s32.totalorder %s24, 0
      %p63 = por %p61, %p62
      %p64 = scmp.ne.s32.totalorder %s50, %s51
      %p65 = scmp.eq.s32.totalorder %s25, 1
      %p66 = por %p64, %p65
      %p68 = scmp.ne.s32.totalorder %s51, %s67
      %p69 = scmp.eq.s32.totalorder %s25, 0
      %p70 = por %p68, %p69
      %s71 = sadd.s32 %s26, %s27
      %p72 = scmp.lt.s32.totalorder %s71, 0
      %s73 = scalar_select %p72, %s71, 0
      %s74 = sadd.s32 %s38, %s34
      %p75 = scmp.lt.s32.totalorder %s74, 0
      %s76 = scalar_select %p75, %s74, 0
      %s77 = ssub.s32 %s73, %s76
      %p78 = scmp.eq.s32.totalorder %s77, 0
      %s80 = sadd.s32 %s79, 1
      %s81 = scalar_select %p78, %s79, %s80
      %p84 = pneg %p78
      %p85 = scmp.eq.s32.totalorder %s19, 1
      %p86 = por %p84, %p85
      %p87 = scmp.ne.s32.totalorder %s79, %s82
      %p88 = scmp.eq.s32.totalorder %s19, 0
      %p89 = por %p87, %p88
      %p90 = scmp.ne.s32.totalorder %s79, %s82
      %p91 = scmp.eq.s32.totalorder %s24, 1
      %p92 = por %p90, %p91
      %p93 = scmp.ne.s32.totalorder %s82, %s83
      %p94 = scmp.eq.s32.totalorder %s24, 0
      %p95 = por %p93, %p94
      %p96 = scmp.ne.s32.totalorder %s82, %s83
      %p97 = scmp.eq.s32.totalorder %s25, 1
      %p98 = por %p96, %p97
      %p100 = scmp.ne.s32.totalorder %s83, %s99
      %p101 = scmp.eq.s32.totalorder %s25, 0
      %p102 = por %p100, %p101
      %s104 = sadd.s32 %s103, 1
      %p107 = scmp.eq.s32.totalorder %s19, 1
      %p108 = scmp.ne.s32.totalorder %s103, %s105
      %p109 = scmp.eq.s32.totalorder %s19, 0
      %p110 = por %p108, %p109
      %p111 = scmp.ne.s32.totalorder %s103, %s105
      %p112 = scmp.eq.s32.totalorder %s24, 1
      %p113 = por %p111, %p112
      %p114 = scmp.ne.s32.totalorder %s105, %s106
      %p115 = scmp.eq.s32.totalorder %s24, 0
      %p116 = por %p114, %p115
      %p117 = scmp.ne.s32.totalorder %s105, %s106
      %p118 = scmp.eq.s32.totalorder %s25, 1
      %p119 = por %p117, %p118
      %p121 = scmp.ne.s32.totalorder %s106, %s120
      %p122 = scmp.eq.s32.totalorder %s25, 0
      %p123 = por %p121, %p122
      %s125 = sadd.s32 %s124, 1
      %p128 = scmp.eq.s32.totalorder %s19, 1
      %p129 = scmp.ne.s32.totalorder %s124, %s126
      %p130 = scmp.eq.s32.totalorder %s19, 0
      %p131 = por %p129, %p130
      %p132 = scmp.ne.s32.totalorder %s124, %s126
      %p133 = scmp.eq.s32.totalorder %s24, 1
      %p134 = por %p132, %p133
      %p135 = scmp.ne.s32.totalorder %s126, %s127
      %p136 = scmp.eq.s32.totalorder %s24, 0
      %p137 = por %p135, %p136
      %p138 = scmp.ne.s32.totalorder %s126, %s127
      %p139 = scmp.eq.s32.totalorder %s25, 1
      %p140 = por %p138, %p139
      %p142 = scmp.ne.s32.totalorder %s127, %s141
      %p143 = scmp.eq.s32.totalorder %s25, 0
      %p144 = por %p142, %p143
      %s145 = ssub.s32 %s26, %s38
      %p146 = scmp.eq.s32.totalorder %s145, 0
      %s148 = sadd.s32 %s147, 1
      %s149 = scalar_select %p146, %s147, %s148
      %p152 = pneg %p146
      %p153 = scmp.eq.s32.totalorder %s19, 1
      %p154 = por %p152, %p153
      %p155 = scmp.ne.s32.totalorder %s147, %s150
      %p156 = scmp.eq.s32.totalorder %s19, 0
      %p157 = por %p155, %p156
      %p158 = scmp.ne.s32.totalorder %s147, %s150
      %p159 = scmp.eq.s32.totalorder %s24, 1
      %p160 = por %p158, %p159
      %p161 = scmp.ne.s32.totalorder %s150, %s151
      %p162 = scmp.eq.s32.totalorder %s24, 0
      %p163 = por %p161, %p162
      %p164 = scmp.ne.s32.totalorder %s150, %s151
      %p165 = scmp.eq.s32.totalorder %s25, 1
      %p166 = por %p164, %p165
      %p168 = scmp.ne.s32.totalorder %s151, %s167
      %p169 = scmp.eq.s32.totalorder %s25, 0
      %p170 = por %p168, %p169
      %p171 = scmp.le.s32.totalorder 1, %s19
      %p172 = scmp.lt.s32.totalorder %s19, 3
      %p173 = pnand %p171, %p172
      %p174 = pneg %p173
      // Predicated region
      $region9: #{tpu_custom_call.1} parent=5 // pred_check
        _
      $region10: #{tpu_custom_call.1} parent=5 // pred_check_branch
        %176 = sbr.rel (%p173) target = $region12
      $region11: #{tpu_custom_call.1} parent=5 // pred_region
        %s177 = ssub.s32 %s19, 1
        // Predicated region
        $region13: #{tpu_custom_call.1} parent=11 // pred_check
          %p178 = pneg %p116
        $region14: #{tpu_custom_call.1} parent=11 // pred_check_branch
          %180 = sbr.rel (%p178) target = $region16
        $region15: #{tpu_custom_call.1} parent=11 // pred_region
          _
        $region16: #{tpu_custom_call.1} parent=11 // pred_fallthru
          _
        // Predicated region
        $region17: #{tpu_custom_call.1} parent=11 // pred_check
          %p181 = pneg %p137
        $region18: #{tpu_custom_call.1} parent=11 // pred_check_branch
          %183 = sbr.rel (%p181) target = $region20
        $region19: #{tpu_custom_call.1} parent=11 // pred_region
          _
        $region20: #{tpu_custom_call.1} parent=11 // pred_fallthru
          _
      $region12: #{tpu_custom_call.1} parent=5 // pred_fallthru
        _
      %p184 = scmp.lt.s32.totalorder %s19, 2
      // Predicated region
      $region21: #{tpu_custom_call.1} parent=5 // pred_check
        %p185 = pneg %p184
      $region22: #{tpu_custom_call.1} parent=5 // pred_check_branch
        %187 = sbr.rel (%p185) target = $region24
      $region23: #{tpu_custom_call.1} parent=5 // pred_region
        // Predicated region
        $region25: #{tpu_custom_call.1} parent=23 // pred_check
          %p188 = pneg %p57
        $region26: #{tpu_custom_call.1} parent=23 // pred_check_branch
          %190 = sbr.rel (%p188) target = $region28
        $region27: #{tpu_custom_call.1} parent=23 // pred_region
          %s191 = sand.u32 %s47, 1
          %s192 = scalar_lea.sflag [#allocation4], %s191
          %s193 = sand.u32 %s47, 1
          %s194 = smul.addr %s193, 8
          %s195 = scalar_lea.vmem [#allocation3], %s194
          %s196 = sadd.s32 %s26, %s27
          %p197 = scmp.lt.s32.totalorder %s196, 0
          %s198 = scalar_select %p197, %s196, 0
          %s199 = smul.u32 4, %s198
          %s200 = ssub.s32 1, %s199
          %s201 = smul.u32 32, %s200
          %s203 = ssub.s32 128, %s201
          %204 = vsyncadd %s192, %s203
          %p205 = scmp.ne.s32.totalorder 0, %s201
          %s206 = smul.addr %s199, 32
          %s207 = scalar_lea.hbm %s0, %s206
          %s208 = smul.u32 2, %s200
          %s209 = sshll.u32 %s195, 4
          %s210 = int_to_ptr.vmem [resolvable:$true] %s209
          %s211 = sshll.u32 %s208, 4
          %215 = dma.hbm_to_vmem [thread:$0]  (%p205), %s207, %s211, %s210, %s192, 32, 32, 2
        $region28: #{tpu_custom_call.1} parent=23 // pred_fallthru
          _
        // Predicated region
        $region29: #{tpu_custom_call.1} parent=23 // pred_check
          %p216 = pneg %p89
        $region30: #{tpu_custom_call.1} parent=23 // pred_check_branch
          %218 = sbr.rel (%p216) target = $region32
        $region31: #{tpu_custom_call.1} parent=23 // pred_region
          %s219 = sand.u32 %s79, 1
          %s220 = scalar_lea.sflag [#allocation7], %s219
          %s221 = sand.u32 %s79, 1
          %s222 = smul.addr %s221, 8
          %s223 = scalar_lea.vmem [#allocation6], %s222
          %s224 = sadd.s32 %s26, %s27
          %p225 = scmp.lt.s32.totalorder %s224, 0
          %s226 = scalar_select %p225, %s224, 0
          %s227 = smul.u32 4, %s226
          %s228 = ssub.s32 1, %s227
          %s229 = smul.u32 32, %s228
          %s231 = ssub.s32 128, %s229
          %232 = vsyncadd %s220, %s231
          %p233 = scmp.ne.s32.totalorder 0, %s229
          %s234 = smul.addr %s227, 32
          %s235 = scalar_lea.hbm %s1, %s234
          %s236 = smul.u32 2, %s228
          %s237 = sshll.u32 %s223, 4
          %s238 = int_to_ptr.vmem [resolvable:$true] %s237
          %s239 = sshll.u32 %s236, 4
          %243 = dma.hbm_to_vmem [thread:$0]  (%p233), %s235, %s239, %s238, %s220, 32, 32, 2
        $region32: #{tpu_custom_call.1} parent=23 // pred_fallthru
          _
      $region24: #{tpu_custom_call.1} parent=5 // pred_fallthru
        _
      %p244 = scmp.le.s32.totalorder 1, %s19
      %p245 = scmp.lt.s32.totalorder %s19, 3
      %p246 = pnand %p244, %p245
      %p247 = pneg %p246
      // Predicated region
      $region33: #{tpu_custom_call.1} parent=5 // pred_check
        _
      $region34: #{tpu_custom_call.1} parent=5 // pred_check_branch
        %249 = sbr.rel (%p246) target = $region36
      $region35: #{tpu_custom_call.1} parent=5 // pred_region
        %s250 = ssub.s32 %s19, 1
        %s251 = sand.u32 %s50, 1
        %s252 = scalar_lea.sflag [#allocation4], %s251
        %s253 = sand.u32 %s50, 1
        %s254 = smul.addr %s253, 8
        %s255 = scalar_lea.vmem [#allocation3], %s254
        // Predicated region
        $region37: #{tpu_custom_call.1} parent=35 // pred_check
          %p256 = pneg %p63
        $region38: #{tpu_custom_call.1} parent=35 // pred_check_branch
          %258 = sbr.rel (%p256) target = $region40
        $region39: #{tpu_custom_call.1} parent=35 // pred_region
          %259 = dma.done %s252, 128
        $region40: #{tpu_custom_call.1} parent=35 // pred_fallthru
          _
        %s260 = sand.u32 %s82, 1
        %s261 = scalar_lea.sflag [#allocation7], %s260
        %s262 = sand.u32 %s82, 1
        %s263 = smul.addr %s262, 8
        %s264 = scalar_lea.vmem [#allocation6], %s263
        // Predicated region
        $region41: #{tpu_custom_call.1} parent=35 // pred_check
          %p265 = pneg %p95
        $region42: #{tpu_custom_call.1} parent=35 // pred_check_branch
          %267 = sbr.rel (%p265) target = $region44
        $region43: #{tpu_custom_call.1} parent=35 // pred_region
          %268 = dma.done %s261, 128
        $region44: #{tpu_custom_call.1} parent=35 // pred_fallthru
          _
        %s269 = sand.u32 %s50, 1
        %s270 = scalar_lea.sflag [#allocation4], %s269
        %s271 = sand.u32 %s50, 1
        %s272 = smul.addr %s271, 8
        %s273 = scalar_lea.vmem [#allocation3], %s272
        %p274 = pneg %p63
        %p275 = pneg %p60
        %s276 = sand.u32 %s82, 1
        %s277 = scalar_lea.sflag [#allocation7], %s276
        %s278 = sand.u32 %s82, 1
        %s279 = smul.addr %s278, 8
        %s280 = scalar_lea.vmem [#allocation6], %s279
        %p281 = pneg %p95
        %p282 = pneg %p92
        %p283 = pneg %p116
        %p284 = pneg %p113
        %p285 = pneg %p137
        %p286 = pneg %p134
        %p287 = pneg %p163
        %p288 = pneg %p160
        %s289 = sand.u32 %s150, 1
        %s290 = scalar_lea.sflag [#allocation5], %s289
        %s291 = sand.u32 %s150, 1
        %s292 = smul.addr %s291, 8
        %s293 = scalar_lea.vmem [#allocation8], %s292
        %s294 = sadd.s32 %s28, %s29
        %p295 = scmp.lt.s32.totalorder %s294, 0
        %s296 = scalar_select %p295, %s294, 0
        %s297 = smul.u32 4, %s296
        %s298 = ssub.s32 1, %s297
        %s299 = smul.u32 32, %s298
        %s300 = sadd.s32 %s28, %s29
        %p301 = scmp.lt.s32.totalorder %s300, 0
        %s302 = scalar_select %p301, %s300, 0
        %s303 = smul.u32 4, %s302
        %s304 = ssub.s32 1, %s303
        %s305 = smul.u32 32, %s304
        %s306 = sadd.s32 %s28, %s29
        %p307 = scmp.eq.s32.totalorder %s29, 0
        // Predicated region
        $region45: #{tpu_custom_call.1} parent=35 // pred_check
          %p308 = pneg %p307
        $region46: #{tpu_custom_call.1} parent=35 // pred_check_branch
          %310 = sbr.rel (%p308) target = $region48
        $region47: #{tpu_custom_call.1} parent=35 // pred_region
          %vm311 = vcmask 1039360
          %312 = vst.msk [vmem:[#allocation2] sm:$0xff] %vm311, 0.0
        $region48: #{tpu_custom_call.1} parent=35 // pred_fallthru
          _
        %v313 = vld [vmem:[%s255] sm:$0xff]
        %v314 = vld [vmem:[%s264] sm:$0xff]
        %v315 = vld [vmem:[%s2] sm:$0x1]
        %v316 = vsub.f32 %v313, %v314
        %v317 = vmul.f32 %v316, %v316
        %v319 = vlaneseq
        %v320 = vshrl.u32 %v319, 7
        %v321 = vsub.s32 0, %v320
        %v322 = vrot.slane %v315, %v321
        %v324 = vsub.f32 %v322, %v314
        %v325 = vmul.f32 %v324, %v324
        %327 = vrot.lane.b32.xlu0 %v317, 127
        %v328 = vpop.permute.xlu0 %327
        %v330 = vadd.f32 %v317, %v328
        %332 = vrot.lane.b32.xlu0 %v325, 127
        %v333 = vpop.permute.xlu0 %332
        %v335 = vadd.f32 %v325, %v333
        %v336 = vrsqrt.pop %v330
        %v337 = vmul.f32 %v330, %v336
        %vm338 = vcmp.eq.f32.partialorder %v330, inf
        %v339 = vsel %vm338, %v330, %v337
        %vm340 = vcmp.eq.f32.partialorder %v330, 0.0
        %v341 = vand.u32 %v330, 2147483648
        %v342 = vsel %vm340, %v341, %v339
        %v343 = vrsqrt.pop %v335
        %v344 = vmul.f32 %v335, %v343
        %vm345 = vcmp.eq.f32.partialorder %v335, inf
        %v346 = vsel %vm345, %v335, %v344
        %vm347 = vcmp.eq.f32.partialorder %v335, 0.0
        %v348 = vand.u32 %v335, 2147483648
        %v349 = vsel %vm347, %v348, %v346
        %v350 = vadd.f32 %v342, %v349
        %v351 = vld [vmem:[%s3] sm:$0x1]
        %v353 = vlaneseq
        %v354 = vshrl.u32 %v353, 7
        %v355 = vsub.s32 0, %v354
        %v356 = vrot.slane %v351, %v355
        %v358 = vmul.f32 %v350, %v356
        %s359 = sadd.s32 %s306, 1
        %s360 = smul.u32 %s359, 8
        %p361 = scmp.le.s32.totalorder %s360, 2
        %p362 = scmp.gt.s32.totalorder %s360, 2
        // Predicated region
        $region49: #{tpu_custom_call.1} parent=35 // pred_check
          %p363 = pneg %p361
        $region50: #{tpu_custom_call.1} parent=35 // pred_check_branch
          %365 = sbr.rel (%p363) target = $region52
        $region51: #{tpu_custom_call.1} parent=35 // pred_region
          %v366 = vld [vmem:[#allocation2] sm:$0xff]
          %v367 = vadd.f32 %v366, %v358
          %vm368 = vcmask 1039360
          %369 = vst.msk [vmem:[#allocation2] sm:$0xff] %vm368, %v367
        $region52: #{tpu_custom_call.1} parent=35 // pred_fallthru
          _
        // Predicated region
        $region53: #{tpu_custom_call.1} parent=35 // pred_check
          %p370 = pneg %p362
        $region54: #{tpu_custom_call.1} parent=35 // pred_check_branch
          %372 = sbr.rel (%p370) target = $region56
        $region55: #{tpu_custom_call.1} parent=35 // pred_region
          %v373 = vlaneseq
          %v374 = vshrl.u32 %v373, 7
          %s375 = smul.u32 %s306, 8
          %v376 = vstv %s375
          %v377 = vadd.s32 %v374, %v376
          %vm378 = vcmp.lt.s32.totalorder %v377, 2
          %v379 = vsel %vm378, 1, 0
          %vm380 = vcmp.eq.s32.totalorder %v379, 1
          %v381 = vsel %vm380, %v358, 0.0
          %v382 = vld [vmem:[#allocation2] sm:$0xff]
          %v383 = vadd.f32 %v382, %v381
          %vm384 = vcmask 1039360
          %385 = vst.msk [vmem:[#allocation2] sm:$0xff] %vm384, %v383
        $region56: #{tpu_custom_call.1} parent=35 // pred_fallthru
          _
        // Predicated region
        $region57: #{tpu_custom_call.1} parent=35 // pred_check
          %p386 = pneg %p307
        $region58: #{tpu_custom_call.1} parent=35 // pred_check_branch
          %388 = sbr.rel (%p386) target = $region60
        $region59: #{tpu_custom_call.1} parent=35 // pred_region
          %v389 = vld [vmem:[#allocation2] sm:$0xff]
          %vm390 = vcmask 1039360
          %v391 = vsel %vm390, %v389, 0.0
          %392 = vadd.xlane.f32.xlu0 %v391
          %v393 = vpop.xlane.xlu0 %392
          %v394 = vrot.slane %v393, 4
          %v395 = vadd.f32 %v393, %v394
          %v396 = vrot.slane %v395, 2
          %v397 = vadd.f32 %v395, %v396
          %v398 = vrot.slane %v397, 1
          %v399 = vadd.f32 %v397, %v398
          %s400 = vtos %v399
          %v401 = vstv %s400
          %402 = vst [vmem:[%s293] sm:$0xff] %v401
        $region60: #{tpu_custom_call.1} parent=35 // pred_fallthru
          _
        %s403 = sand.u32 %s150, 1
        %s404 = scalar_lea.sflag [#allocation5], %s403
        %s405 = sand.u32 %s150, 1
        %s406 = smul.addr %s405, 8
        %s407 = scalar_lea.vmem [#allocation8], %s406
        // Predicated region
        $region61: #{tpu_custom_call.1} parent=35 // pred_check
          %p408 = pneg %p160
        $region62: #{tpu_custom_call.1} parent=35 // pred_check_branch
          %410 = sbr.rel (%p408) target = $region64
        $region63: #{tpu_custom_call.1} parent=35 // pred_region
          %s412 = ssub.s32 128, 128
          %413 = vsyncadd %s404, %s412
          %s414 = smul.addr %s28, 128
          %s415 = scalar_lea.hbm %s4, %s414
          %s417 = sshll.u32 %s407, 4
          %s418 = int_to_ptr.vmem [resolvable:$true] %s417
          %420 = dma.vmem_to_hbm [thread:$0]  %s418, 128, %s415, %s404
        $region64: #{tpu_custom_call.1} parent=35 // pred_fallthru
          _
      $region36: #{tpu_custom_call.1} parent=5 // pred_fallthru
        _
      %p421 = scmp.le.s32.totalorder 2, %s19
      // Predicated region
      $region65: #{tpu_custom_call.1} parent=5 // pred_check
        %p422 = pneg %p421
      $region66: #{tpu_custom_call.1} parent=5 // pred_check_branch
        %424 = sbr.rel (%p422) target = $region68
      $region67: #{tpu_custom_call.1} parent=5 // pred_region
        %s425 = ssub.s32 %s19, 2
        // Predicated region
        $region69: #{tpu_custom_call.1} parent=67 // pred_check
          %p426 = pneg %p166
        $region70: #{tpu_custom_call.1} parent=67 // pred_check_branch
          %428 = sbr.rel (%p426) target = $region72
        $region71: #{tpu_custom_call.1} parent=67 // pred_region
          %s429 = sand.u32 %s151, 1
          %s430 = scalar_lea.sflag [#allocation5], %s429
          %s431 = sand.u32 %s151, 1
          %s432 = smul.addr %s431, 8
          %s433 = scalar_lea.vmem [#allocation8], %s432
          %434 = dma.done %s430, 128
        $region72: #{tpu_custom_call.1} parent=67 // pred_fallthru
          _
      $region68: #{tpu_custom_call.1} parent=5 // pred_fallthru
        _
    $region6: #{tpu_custom_call.1} parent=1 // loop_footer
      %s23 = sadd.s32 1, %s19
    $region7: #{tpu_custom_call.1} parent=1 // loop_footer_branch
      %18 = sbr.rel target = $region3
    $region8: #{tpu_custom_call.1} parent=1 // loop_exit
      _
    %435 = vsyncpa [#allocation4], 1
    %s436 = scalar_lea.sflag [#allocation4], 1
    %437 = vsyncpa %s436, 1
    %438 = vsyncpa [#allocation7], 1
    %s439 = scalar_lea.sflag [#allocation7], 1
    %440 = vsyncpa %s439, 1
    %441 = vsyncpa [#allocation5], 1
    %s442 = scalar_lea.sflag [#allocation5], 1
    %443 = vsyncpa %s442, 1

</llo_original>
